<compile_context>
chip_gen: v5e
topology: v5e:2x2
jax: 0.10.0
libtpu: 0.0.40
codegen_flags: <defaults>
</compile_context>

<pallas_src>
import functools

import jax
import jax.numpy as jnp
from jax.experimental import pallas as pl
from jax.experimental.pallas import tpu as pltpu


def _round_up(x, m):
    return ((x + m - 1) // m) * m


def _pad2(a, rows, cols):
    r, c = a.shape
    return jnp.pad(a, ((0, rows - r), (0, cols - c)))


def _pick_tile(n_pad, target):
    """Largest multiple of 128 <= target that divides n_pad."""
    t = min(target, n_pad)
    while t > 128 and n_pad % t != 0:
        t -= 128
    return max(t, 128)


# ---------------------------------------------------------------------------
# Stage 1: feature GEMM   XW = X @ W      (row-tiled, single matmul per tile)
# ---------------------------------------------------------------------------
def _xw_kernel(x_ref, w_ref, o_ref):
    o_ref[...] = jnp.dot(x_ref[...], w_ref[...],
                         preferred_element_type=jnp.float32)


def _feature_gemm(x_pad, w_pad, *, tm):
    n_pad, fin_p = x_pad.shape
    fout_p = w_pad.shape[1]
    flops = 2 * n_pad * fin_p * fout_p
    bytes_accessed = 4 * (n_pad * fin_p + fin_p * fout_p + n_pad * fout_p)
    return pl.pallas_call(
        _xw_kernel,
        out_shape=jax.ShapeDtypeStruct((n_pad, fout_p), jnp.float32),
        grid_spec=pltpu.PrefetchScalarGridSpec(
            num_scalar_prefetch=0,
            grid=(n_pad // tm,),
            in_specs=[
                pl.BlockSpec((tm, fin_p), lambda i: (i, 0)),          # X rows
                pl.BlockSpec((fin_p, fout_p), lambda i: (0, 0)),      # W resident
            ],
            out_specs=pl.BlockSpec((tm, fout_p), lambda i: (i, 0)),
        ),
        compiler_params=pltpu.CompilerParams(
            dimension_semantics=("parallel",),
            vmem_limit_bytes=48 * 1024 * 1024,
        ),
        cost_estimate=pl.CostEstimate(
            flops=flops, transcendentals=0, bytes_accessed=bytes_accessed),
    )(x_pad, w_pad)


# ---------------------------------------------------------------------------
# Stage 2: aggregation   out = A @ XW + b   (optional ReLU)
# Grid = (row tiles of A, K tiles of A); K is the reduction axis.
# ---------------------------------------------------------------------------
def _agg_kernel(a_ref, xw_ref, b_ref, o_ref, acc_ref, *, relu):
    k = pl.program_id(1)

    @pl.when(k == 0)
    def _():
        acc_ref[...] = jnp.zeros_like(acc_ref)

    acc_ref[...] += jnp.dot(a_ref[...], xw_ref[...],
                            preferred_element_type=jnp.float32)

    @pl.when(k == pl.num_programs(1) - 1)
    def _():
        r = acc_ref[...] + b_ref[...]
        if relu:
            r = jnp.maximum(r, 0.0)
        o_ref[...] = r.astype(o_ref.dtype)


def _aggregate(a_pad, xw_pad, b_pad, *, relu, tm, tk):
    n_pad = a_pad.shape[0]
    fout_p = xw_pad.shape[1]
    grid = (n_pad // tm, n_pad // tk)
    flops = 2 * n_pad * n_pad * fout_p
    bytes_accessed = 4 * (n_pad * n_pad + n_pad * fout_p + fout_p
                          + n_pad * fout_p)
    return pl.pallas_call(
        functools.partial(_agg_kernel, relu=relu),
        out_shape=jax.ShapeDtypeStruct((n_pad, fout_p), jnp.float32),
        grid_spec=pltpu.PrefetchScalarGridSpec(
            num_scalar_prefetch=0,
            grid=grid,
            in_specs=[
                pl.BlockSpec((tm, tk), lambda i, k: (i, k)),        # A tile
                pl.BlockSpec((tk, fout_p), lambda i, k: (k, 0)),    # XW K-slab
                pl.BlockSpec((1, fout_p), lambda i, k: (0, 0)),     # b resident
            ],
            out_specs=pl.BlockSpec((tm, fout_p), lambda i, k: (i, 0)),
            scratch_shapes=[pltpu.VMEM((tm, fout_p), jnp.float32)],
        ),
        compiler_params=pltpu.CompilerParams(
            dimension_semantics=("parallel", "arbitrary"),
            vmem_limit_bytes=48 * 1024 * 1024,
        ),
        cost_estimate=pl.CostEstimate(
            flops=flops, transcendentals=0, bytes_accessed=bytes_accessed),
    )(a_pad, xw_pad, b_pad)


# ---------------------------------------------------------------------------
# Encoder forward: layer1 -> H, fused (mu | logstd) layer2.
# ---------------------------------------------------------------------------
def encoder_forward(a_norm, x, params, *, tm=256, tk=512):
    """a_norm: [N, N] normalized adjacency, x: [N, Fin]. Returns (mu, logstd)."""
    w1, b1, wmu, bmu, wls, bls = params
    N, fin = x.shape
    fo = wmu.shape[1]

    # Node-dim padding to a multiple of 128; tiles adapt to divisors of n_pad.
    n_pad = _round_up(N, 128)
    tm = _pick_tile(n_pad, tm)
    tk = _pick_tile(n_pad, tk)

    fin_p = _round_up(fin, 128)
    fh_p = _round_up(w1.shape[1], 128)
    fcat = 2 * fo
    fcat_p = _round_up(fcat, 128)

    # Zero-padding keeps results exact: padded A rows/cols are zero, padded
    # weight rows/cols are zero, so valid output rows/cols are untouched.
    a_p = _pad2(a_norm.astype(jnp.float32), n_pad, n_pad)
    x_p = _pad2(x.astype(jnp.float32), n_pad, fin_p)
    w1_p = _pad2(w1, fin_p, fh_p)
    b1_p = _pad2(b1.reshape(1, -1), 1, fh_p)

    # Fuse conv_mu / conv_logstd into one lane-dense weight+bias.
    wcat_p = _pad2(jnp.concatenate([wmu, wls], axis=1), fh_p, fcat_p)
    bcat_p = _pad2(jnp.concatenate([bmu.reshape(1, -1), bls.reshape(1, -1)],
                                   axis=1), 1, fcat_p)

    # Layer 1: H = relu(A @ (X @ W1) + b1)
    xw1 = _feature_gemm(x_p, w1_p, tm=tm)
    h_p = _aggregate(a_p, xw1, b1_p, relu=True, tm=tm, tk=tk)

    # Layer 2 (fused): [mu | logstd] = A @ (H @ [Wmu|Wls]) + [bmu|bls]
    hw2 = _feature_gemm(h_p, wcat_p, tm=tm)
    out_p = _aggregate(a_p, hw2, bcat_p, relu=False, tm=tm, tk=tk)

    mu = out_p[:N, :fo]
    logstd = out_p[:N, fo:fcat]
    return mu, logstd
    # TODO(synk): for large sparse graphs, replace the dense N x N aggregation
    # with scalar-prefetch block-nnz skipping (PrefetchScalarGridSpec) and
    # bf16 A / XW tiles.


# ---------------------------------------------------------------------------
# Glue (plain JAX): GCN adjacency normalization + parameter init.
# ---------------------------------------------------------------------------
def gcn_normalized_adjacency(edge_index, num_nodes):
    """Dense D^-1/2 (A + I) D^-1/2, matching torch_geometric gcn_norm defaults."""
    src = edge_index[0]
    dst = edge_index[1]
    loop = jnp.arange(num_nodes, dtype=edge_index.dtype)
    src = jnp.concatenate([src, loop])
    dst = jnp.concatenate([dst, loop])
    a = jnp.zeros((num_nodes, num_nodes), jnp.float32).at[dst, src].add(1.0)
    deg = a.sum(axis=1)
    deg_inv_sqrt = jnp.where(deg > 0, 1.0 / jnp.sqrt(deg), 0.0)
    return deg_inv_sqrt[:, None] * a * deg_inv_sqrt[None, :]


def glorot(key, shape):
    fan_in, fan_out = shape
    limit = jnp.sqrt(6.0 / (fan_in + fan_out))
    return jax.random.uniform(key, shape, jnp.float32, -limit, limit)


def init_encoder_params(key, dim_in, dim_out):
    k1, k2, k3 = jax.random.split(key, 3)
    hidden = 2 * dim_out
    w1 = glorot(k1, (dim_in, hidden))
    b1 = jnp.zeros((1, hidden), jnp.float32)
    wmu = glorot(k2, (hidden, dim_out))
    bmu = jnp.zeros((1, dim_out), jnp.float32)
    wls = glorot(k3, (hidden, dim_out))
    bls = jnp.zeros((1, dim_out), jnp.float32)
    return (w1, b1, wmu, bmu, wls, bls)


# ---------------------------------------------------------------------------
# Demo / self-test
# ---------------------------------------------------------------------------
if __name__ == "__main__":
    key = jax.random.PRNGKey(0)
    kx, kp = jax.random.split(key)

    N = 16          # nodes
    dim_in = 8      # input feature dim
    dim_out = 4     # latent dim (hidden = 2*dim_out = 8)

    # node features
    x = jax.random.normal(kx, (N, dim_in), jnp.float32)

    # deterministic ring graph, both directions -> edge_index [2, 2N]
    idx = jnp.arange(N, dtype=jnp.int32)
    nxt = (idx + 1) % N
    edge_index = jnp.stack([jnp.concatenate([idx, nxt]),
                            jnp.concatenate([nxt, idx])], axis=0)

    a_norm = gcn_normalized_adjacency(edge_index, N)
    params = init_encoder_params(kp, dim_in, dim_out)

    mu, logstd = encoder_forward(a_norm, x, params)
    jax.block_until_ready((mu, logstd))

    # pure-JAX reference check
    w1, b1, wmu, bmu, wls, bls = params
    h_ref = jnp.maximum(a_norm @ (x @ w1) + b1, 0.0)
    mu_ref = a_norm @ (h_ref @ wmu) + bmu
    ls_ref = a_norm @ (h_ref @ wls) + bls
    assert mu.shape == (N, dim_out) and logstd.shape == (N, dim_out)
    assert jnp.allclose(mu, mu_ref, atol=1e-4, rtol=1e-4), "mu mismatch"
    assert jnp.allclose(logstd, ls_ref, atol=1e-4, rtol=1e-4), "logstd mismatch"

    print("KERNEL_OK")
</pallas_src>

<mosaic_0001>
module attributes {stable_mosaic.version = 11 : i64} {
  func.func @_xw_kernel(%arg0: i32, %arg1: memref<128x128xf32, #tpu.memory_space<vmem>>, %arg2: memref<128x128xf32, #tpu.memory_space<vmem>>, %arg3: memref<128x128xf32, #tpu.memory_space<vmem>>) attributes {dimension_semantics = [#tpu.dimension_semantics<parallel>], iteration_bounds = array<i64: 1>, scalar_prefetch = 0 : i64, scratch_operands = 0 : i64, tpu.core_type = #tpu.core_type<tc>, window_params = [{transform_indices = @transform_0, window_bounds = array<i64: 128, 128>}, {pipeline_mode = #tpu.pipeline_mode<synchronous>, transform_indices = @transform_1, window_bounds = array<i64: 128, 128>}, {transform_indices = @transform_2, window_bounds = array<i64: 128, 128>}]} {
    %c0 = arith.constant 0 : index
    %c0_0 = arith.constant 0 : index
    %0 = vector.load %arg1[%c0, %c0_0] : memref<128x128xf32, #tpu.memory_space<vmem>>, vector<128x128xf32>
    %c0_1 = arith.constant 0 : index
    %c0_2 = arith.constant 0 : index
    %1 = vector.load %arg2[%c0_1, %c0_2] : memref<128x128xf32, #tpu.memory_space<vmem>>, vector<128x128xf32>
    %cst = arith.constant dense<0.000000e+00> : vector<128x128xf32>
    %2 = tpu.matmul %0, %1, %cst {dimension_numbers = #tpu.dot_dimension_numbers<[1], [0], [0], [1], [0, 0, 1, 1], [], []>} : vector<128x128xf32>, vector<128x128xf32>, vector<128x128xf32> -> vector<128x128xf32>
    %c0_3 = arith.constant 0 : index
    %c0_4 = arith.constant 0 : index
    %3 = vector.load %arg3[%c0_3, %c0_4] : memref<128x128xf32, #tpu.memory_space<vmem>>, vector<128x128xf32>
    tpu.vector_store %arg3[%c0_3, %c0_4], %2 {strides = array<i32>} : memref<128x128xf32, #tpu.memory_space<vmem>>, vector<128x128xf32>,
    return
  }
  func.func @transform_0(%arg0: i32) -> (i32, i32) {
    %c0_i32 = arith.constant 0 : i32
    %c0_i32_0 = arith.constant 0 : i32
    return %arg0, %c0_i32 : i32, i32
  }
  func.func @transform_1(%arg0: i32) -> (i32, i32) {
    %c0_i32 = arith.constant 0 : i32
    %c0_i32_0 = arith.constant 0 : i32
    %c0_i32_1 = arith.constant 0 : i32
    return %c0_i32, %c0_i32_0 : i32, i32
  }
  func.func @transform_2(%arg0: i32) -> (i32, i32) {
    %c0_i32 = arith.constant 0 : i32
    %c0_i32_0 = arith.constant 0 : i32
    return %arg0, %c0_i32 : i32, i32
  }
}

</mosaic_0001>

<llo_original>
// kernel: tpu_custom_call.1
$region0: #{tpu_custom_call.1}
  #allocation0 [shape = 'u32[]', space=smem, size = 0x4, offset = 0x4, fixed_abs, tag = 'smem constant byte address 0x4 - core index']
  #allocation1 [shape = 'u32[72,128]{1,0:T(1,128)}', space=vmem, size = 0x9000, scoped, tag = 'internal scratch']
  %s0 = inlined_call_operand.hbm [shape: f32[128,128], index: 0, kind: input, shape index: {}]
  %s1 = inlined_call_operand.hbm [shape: f32[128,128], index: 1, kind: input, shape index: {}]
  %s2 = inlined_call_operand.hbm [shape: f32[128,128], index: 2, kind: output, shape index: {}]
  %s3 = sld [smem:[#allocation0]]
  $region26: #{tpu_custom_call.1} parent=0
    _
  %s5 = ssub.s32 1, %s3
  %s6 = scalar_select 0, %s5, %s3
  $region1: #{tpu_custom_call.1} parent=0
    #allocation2 [shape = 'u8[65536]{0}', space=vmem, size = 0x10000, scoped, tag = 'input window, operand 0, single buffered']
    #allocation3 [shape = 's32[1]{0}', space=sflag, size = 0x4, scoped, tag = 'scoped memory for tpu_custom_call.1']
    #allocation4 [shape = 's32[1]{0}', space=sflag, size = 0x4, scoped, tag = 'scoped memory for tpu_custom_call.1']
    #allocation5 [shape = 'u8[65536]{0}', space=vmem, size = 0x10000, scoped, tag = 'input window, operand 1, single buffered']
    #allocation6 [shape = 's32[1]{0}', space=sflag, size = 0x4, scoped, tag = 'scoped memory for tpu_custom_call.1']
    #allocation7 [shape = 'u8[65536]{0}', space=vmem, size = 0x10000, scoped, tag = 'output window, operand 0, single buffered']
    %7 = vsyncpa [#allocation3], 0
    %8 = vsyncpa [#allocation6], 0
    %9 = vsyncpa [#allocation4], 0
    // Predicated region
    $region2: #{tpu_custom_call.1} parent=1 // pred_check
      _
    $region3: #{tpu_custom_call.1} parent=1 // pred_check_branch
      %11 = sbr.rel (0) target = $region5
    $region4: #{tpu_custom_call.1} parent=1 // pred_region
      %13 = vsyncadd [#allocation3], 0
      %s14 = sshll.u32 %s0, 4
      %s15 = int_to_ptr.hbm [resolvable:$true] %s14
      %s16 = sshll.u32 [#allocation2], 4
      %s17 = int_to_ptr.vmem [resolvable:$true] %s16
      %22 = dma.hbm_to_vmem [thread:$0]  %s15, 2048, %s17, [#allocation3], 128, 128, 8
    $region5: #{tpu_custom_call.1} parent=1 // pred_fallthru
      _
    // Predicated region
    $region6: #{tpu_custom_call.1} parent=1 // pred_check
      _
    $region7: #{tpu_custom_call.1} parent=1 // pred_check_branch
      %24 = sbr.rel (0) target = $region9
    $region8: #{tpu_custom_call.1} parent=1 // pred_region
      %26 = vsyncadd [#allocation6], 0
      %s27 = sshll.u32 %s1, 4
      %s28 = int_to_ptr.hbm [resolvable:$true] %s27
      %s29 = sshll.u32 [#allocation5], 4
      %s30 = int_to_ptr.vmem [resolvable:$true] %s29
      %35 = dma.hbm_to_vmem [thread:$0]  %s28, 2048, %s30, [#allocation6], 128, 128, 8
    $region9: #{tpu_custom_call.1} parent=1 // pred_fallthru
      _
    // Predicated region
    $region10: #{tpu_custom_call.1} parent=1 // pred_check
      _
    $region11: #{tpu_custom_call.1} parent=1 // pred_check_branch
      %37 = sbr.rel (0) target = $region13
    $region12: #{tpu_custom_call.1} parent=1 // pred_region
      %39 = dma.done [#allocation3], 2048
    $region13: #{tpu_custom_call.1} parent=1 // pred_fallthru
      _
    // Predicated region
    $region14: #{tpu_custom_call.1} parent=1 // pred_check
      _
    $region15: #{tpu_custom_call.1} parent=1 // pred_check_branch
      %41 = sbr.rel (0) target = $region17
    $region16: #{tpu_custom_call.1} parent=1 // pred_region
      %43 = dma.done [#allocation6], 2048
    $region17: #{tpu_custom_call.1} parent=1 // pred_fallthru
      _
    %v44 = vld [vmem:[#allocation2] sm:$0xff]
    %v45 = vld [vmem:[#allocation2 + $0x8] sm:$0xff]
    %v46 = vld [vmem:[#allocation2 + $0x10] sm:$0xff]
    %v47 = vld [vmem:[#allocation2 + $0x18] sm:$0xff]
    %v48 = vld [vmem:[#allocation2 + $0x20] sm:$0xff]
    %v49 = vld [vmem:[#allocation2 + $0x28] sm:$0xff]
    %v50 = vld [vmem:[#allocation2 + $0x30] sm:$0xff]
    %v51 = vld [vmem:[#allocation2 + $0x38] sm:$0xff]
    %v52 = vld [vmem:[#allocation2 + $0x40] sm:$0xff]
    %v53 = vld [vmem:[#allocation2 + $0x48] sm:$0xff]
    %v54 = vld [vmem:[#allocation2 + $0x50] sm:$0xff]
    %v55 = vld [vmem:[#allocation2 + $0x58] sm:$0xff]
    %v56 = vld [vmem:[#allocation2 + $0x60] sm:$0xff]
    %v57 = vld [vmem:[#allocation2 + $0x68] sm:$0xff]
    %v58 = vld [vmem:[#allocation2 + $0x70] sm:$0xff]
    %v59 = vld [vmem:[#allocation2 + $0x78] sm:$0xff]
    %v60 = vld [vmem:[#allocation5] sm:$0xff]
    %v61 = vld [vmem:[#allocation5 + $0x8] sm:$0xff]
    %v62 = vld [vmem:[#allocation5 + $0x10] sm:$0xff]
    %v63 = vld [vmem:[#allocation5 + $0x18] sm:$0xff]
    %v64 = vld [vmem:[#allocation5 + $0x20] sm:$0xff]
    %v65 = vld [vmem:[#allocation5 + $0x28] sm:$0xff]
    %v66 = vld [vmem:[#allocation5 + $0x30] sm:$0xff]
    %v67 = vld [vmem:[#allocation5 + $0x38] sm:$0xff]
    %v68 = vld [vmem:[#allocation5 + $0x40] sm:$0xff]
    %v69 = vld [vmem:[#allocation5 + $0x48] sm:$0xff]
    %v70 = vld [vmem:[#allocation5 + $0x50] sm:$0xff]
    %v71 = vld [vmem:[#allocation5 + $0x58] sm:$0xff]
    %v72 = vld [vmem:[#allocation5 + $0x60] sm:$0xff]
    %v73 = vld [vmem:[#allocation5 + $0x68] sm:$0xff]
    %v74 = vld [vmem:[#allocation5 + $0x70] sm:$0xff]
    %v75 = vld [vmem:[#allocation5 + $0x78] sm:$0xff]
    %76 = vmatpush.msra.mxu0 %v75
    %77 = vmatpush.msra.mxu0 %v74
    %78 = vmatpush.msra.mxu0 %v73
    %79 = vmatpush.msra.mxu0 %v72
    %80 = vmatpush.msra.mxu0 %v71
    %81 = vmatpush.msra.mxu0 %v70
    %82 = vmatpush.msra.mxu0 %v69
    %83 = vmatpush.msra.mxu0 %v68
    %84 = vmatpush.msra.mxu0 %v67
    %85 = vmatpush.msra.mxu0 %v66
    %86 = vmatpush.msra.mxu0 %v65
    %87 = vmatpush.msra.mxu0 %v64
    %88 = vmatpush.msra.mxu0 %v63
    %89 = vmatpush.msra.mxu0 %v62
    %90 = vmatpush.msra.mxu0 %v61
    %91 = vmatpush.msra.mxu0 %v60
    %92 = vmatmul.f32.gmra.mxu0 %v44
    %v93 = vpop.f32.mrf.mxu0
    %v94 = vadd.f32 0.0, %v93
    %95 = vmatmul.f32.gmra.mxu0 %v45
    %v96 = vpop.f32.mrf.mxu0
    %v97 = vadd.f32 0.0, %v96
    %98 = vmatmul.f32.gmra.mxu0 %v46
    %v99 = vpop.f32.mrf.mxu0
    %v100 = vadd.f32 0.0, %v99
    %101 = vmatmul.f32.gmra.mxu0 %v47
    %v102 = vpop.f32.mrf.mxu0
    %v103 = vadd.f32 0.0, %v102
    %104 = vmatmul.f32.gmra.mxu0 %v48
    %v105 = vpop.f32.mrf.mxu0
    %v106 = vadd.f32 0.0, %v105
    %107 = vmatmul.f32.gmra.mxu0 %v49
    %v108 = vpop.f32.mrf.mxu0
    %v109 = vadd.f32 0.0, %v108
    %110 = vmatmul.f32.gmra.mxu0 %v50
    %v111 = vpop.f32.mrf.mxu0
    %v112 = vadd.f32 0.0, %v111
    %113 = vmatmul.f32.gmra.mxu0 %v51
    %v114 = vpop.f32.mrf.mxu0
    %v115 = vadd.f32 0.0, %v114
    %116 = vmatmul.f32.gmra.mxu0 %v52
    %v117 = vpop.f32.mrf.mxu0
    %v118 = vadd.f32 0.0, %v117
    %119 = vmatmul.f32.gmra.mxu0 %v53
    %v120 = vpop.f32.mrf.mxu0
    %v121 = vadd.f32 0.0, %v120
    %122 = vmatmul.f32.gmra.mxu0 %v54
    %v123 = vpop.f32.mrf.mxu0
    %v124 = vadd.f32 0.0, %v123
    %125 = vmatmul.f32.gmra.mxu0 %v55
    %v126 = vpop.f32.mrf.mxu0
    %v127 = vadd.f32 0.0, %v126
    %128 = vmatmul.f32.gmra.mxu0 %v56
    %v129 = vpop.f32.mrf.mxu0
    %v130 = vadd.f32 0.0, %v129
    %131 = vmatmul.f32.gmra.mxu0 %v57
    %v132 = vpop.f32.mrf.mxu0
    %v133 = vadd.f32 0.0, %v132
    %134 = vmatmul.f32.gmra.mxu0 %v58
    %v135 = vpop.f32.mrf.mxu0
    %v136 = vadd.f32 0.0, %v135
    %137 = vmatmul.f32.gmra.mxu0 %v59
    %v138 = vpop.f32.mrf.mxu0
    %v139 = vadd.f32 0.0, %v138
    %140 = vdwg.mxu0
    %141 = vst [vmem:[#allocation7] sm:$0xff] %v94
    %142 = vst [vmem:[#allocation7 + $0x8] sm:$0xff] %v97
    %143 = vst [vmem:[#allocation7 + $0x10] sm:$0xff] %v100
    %144 = vst [vmem:[#allocation7 + $0x18] sm:$0xff] %v103
    %145 = vst [vmem:[#allocation7 + $0x20] sm:$0xff] %v106
    %146 = vst [vmem:[#allocation7 + $0x28] sm:$0xff] %v109
    %147 = vst [vmem:[#allocation7 + $0x30] sm:$0xff] %v112
    %148 = vst [vmem:[#allocation7 + $0x38] sm:$0xff] %v115
    %149 = vst [vmem:[#allocation7 + $0x40] sm:$0xff] %v118
    %150 = vst [vmem:[#allocation7 + $0x48] sm:$0xff] %v121
    %151 = vst [vmem:[#allocation7 + $0x50] sm:$0xff] %v124
    %152 = vst [vmem:[#allocation7 + $0x58] sm:$0xff] %v127
    %153 = vst [vmem:[#allocation7 + $0x60] sm:$0xff] %v130
    %154 = vst [vmem:[#allocation7 + $0x68] sm:$0xff] %v133
    %155 = vst [vmem:[#allocation7 + $0x70] sm:$0xff] %v136
    %156 = vst [vmem:[#allocation7 + $0x78] sm:$0xff] %v139
    // Predicated region
    $region18: #{tpu_custom_call.1} parent=1 // pred_check
      _
    $region19: #{tpu_custom_call.1} parent=1 // pred_check_branch
      %158 = sbr.rel (0) target = $region21
    $region20: #{tpu_custom_call.1} parent=1 // pred_region
      %160 = vsyncadd [#allocation4], 0
      %s161 = sshll.u32 [#allocation7], 4
      %s162 = int_to_ptr.vmem [resolvable:$true] %s161
      %s163 = sshll.u32 %s2, 4
      %s164 = int_to_ptr.hbm [resolvable:$true] %s163
      %169 = dma.vmem_to_hbm [thread:$0]  %s162, 2048, %s164, [#allocation4], 128, 128, 8
    $region21: #{tpu_custom_call.1} parent=1 // pred_fallthru
      _
    // Predicated region
    $region22: #{tpu_custom_call.1} parent=1 // pred_check
      _
    $region23: #{tpu_custom_call.1} parent=1 // pred_check_branch
      %171 = sbr.rel (0) target = $region25
    $region24: #{tpu_custom_call.1} parent=1 // pred_region
      %173 = dma.done [#allocation4], 2048
    $region25: #{tpu_custom_call.1} parent=1 // pred_fallthru
      _
    %174 = vsyncpa [#allocation3], 1
    %175 = vsyncpa [#allocation6], 1
    %176 = vsyncpa [#allocation4], 1

</llo_original>
